<compile_context>
chip_gen: v6e
topology: v6e:2x2x1
jax: 0.10.0
libtpu: 0.0.40
codegen_flags: <defaults>
</compile_context>

<pallas_src>
import jax
import jax.numpy as jnp
from jax.experimental import pallas as pl
from jax.experimental.pallas import tpu as pltpu


def _decoder_kernel(emb_ref, hid_ref, enc_ref, mask_ref,
                    attn_wh_ref, attn_we_ref, attn_b_ref, attn_v_ref,
                    w_ih_ref, w_hh_ref, b_ih_ref, b_hh_ref,
                    fc_w_ref, fc_b_ref,
                    out_ref):
    emb = emb_ref[...]          # [B, E]        bf16
    hid_f32 = hid_ref[...]      # [B, H]        f32
    enc = enc_ref[...]          # [B, S, 2*Eh]  bf16
    mask = mask_ref[...]        # [B, S]        f32

    B, S, Eh2 = enc.shape
    H = hid_f32.shape[1]
    O = fc_b_ref.shape[1]

    hid_bf = hid_f32.astype(jnp.bfloat16)

    # ---- attention: energy = tanh(hid @ Wh + enc @ We + b); score = v . energy ----
    # (attention weights pre-split once in prepare_params -> no in-kernel
    #  concatenate and no broadcast_to(hid, (S, H)) materialization)
    hid_proj = (jnp.dot(hid_bf, attn_wh_ref[...],
                        preferred_element_type=jnp.float32)
                + attn_b_ref[...])                                    # [B, H] f32
    # flat reshape is fine while S stays small (<= a few 8-row tiles)
    enc_flat = enc.reshape(B * S, Eh2)                                # [B*S, 2*Eh]
    enc_proj = jnp.dot(enc_flat, attn_we_ref[...],
                       preferred_element_type=jnp.float32)            # [B*S, H]
    energy = jnp.tanh(enc_proj.reshape(B, S, H) + hid_proj[:, None, :])  # [B, S, H]

    # scores via VPU multiply + lane reduce (no transpose, no degenerate matmul)
    v = attn_v_ref[...].reshape(1, 1, H)                              # [1, 1, H] f32
    scores = jnp.sum(energy * v, axis=-1)                             # [B, S]
    scores = jnp.where(mask == 0.0, -1e10, scores)                    # masked_fill
    scores = scores - jnp.max(scores, axis=-1, keepdims=True)
    exp_s = jnp.exp(scores)
    a = exp_s / jnp.sum(exp_s, axis=-1, keepdims=True)                # softmax over src

    # ---- weighted context: bmm(a, enc) as multiply + sublane reduce ----
    weighted = jnp.sum(a[:, :, None] * enc.astype(jnp.float32), axis=1)   # [B, 2*Eh] f32
    w_bf = weighted.astype(jnp.bfloat16)

    # ---- single-step GRU cell (PyTorch gate order: r, z, n) ----
    # activation concat (few-KB VMEM) + ONE K=E+2*Eh MXU push against un-split w_ih
    rnn_in = jnp.concatenate([emb, w_bf], axis=1)                     # [B, E+2*Eh] bf16
    gi = (jnp.dot(rnn_in, w_ih_ref[...], preferred_element_type=jnp.float32)
          + b_ih_ref[...])                                            # [B, 3H]
    gh = (jnp.dot(hid_bf, w_hh_ref[...], preferred_element_type=jnp.float32)
          + b_hh_ref[...])                                            # [B, 3H]
    r = jax.nn.sigmoid(gi[:, 0:H] + gh[:, 0:H])
    z = jax.nn.sigmoid(gi[:, H:2 * H] + gh[:, H:2 * H])
    n = jnp.tanh(gi[:, 2 * H:3 * H] + r * gh[:, 2 * H:3 * H])
    h_new = (1.0 - z) * n + z * hid_f32                               # [B, H] f32

    # ---- prediction = fc_out([output, weighted, embedded]) ----
    # activation concat + ONE K=H+2*Eh+E MXU push against un-split fc_w
    fc_in = jnp.concatenate([h_new.astype(jnp.bfloat16), w_bf, emb], axis=1)  # [B, H+2*Eh+E]
    pred = (jnp.dot(fc_in, fc_w_ref[...], preferred_element_type=jnp.float32)
            + fc_b_ref[...])                                          # [B, O] f32

    # ---- pack all three results into one lane-dense slab (single full-width store) ----
    pad = out_ref.shape[1] - (O + H + S)
    parts = [pred, h_new, a]
    if pad > 0:
        parts.append(jnp.zeros((B, pad), jnp.float32))
    out_ref[...] = jnp.concatenate(parts, axis=1)


# --------------------------------------------------------------------------
# One-time preparation (hoisted out of the per-token decode step)
# --------------------------------------------------------------------------
def prepare_params(params):
    """Per-model weight cast/split work — run ONCE, not per decode step."""
    H = params["attn_w"].shape[1]
    bf = lambda x: x.astype(jnp.bfloat16)
    f32 = lambda x: x.astype(jnp.float32)
    return {
        "emb_table": bf(params["emb_table"]),
        # attention weights pre-split (hidden part / encoder part)
        "attn_wh": bf(params["attn_w"][:H]),
        "attn_we": bf(params["attn_w"][H:]),
        "attn_b": f32(params["attn_b"]),
        "attn_v": f32(params["attn_v"]),
        # GRU / fc weights stay un-split; kernel concatenates activations
        "w_ih": bf(params["w_ih"]),
        "w_hh": bf(params["w_hh"]),
        "b_ih": f32(params["b_ih"]),
        "b_hh": f32(params["b_hh"]),
        "fc_w": bf(params["fc_w"]),
        "fc_b": f32(params["fc_b"]),
    }


def prepare_sequence(encoder_outputs, mask):
    """Per-source-sequence prep (constant across decode steps) — run ONCE."""
    enc = jnp.transpose(encoder_outputs, (1, 0, 2)).astype(jnp.bfloat16)  # [B, S, 2*enc_hid]
    return enc, mask.astype(jnp.float32)


# --------------------------------------------------------------------------
# Per-token decode step
# --------------------------------------------------------------------------
def decoder_forward(tokens, hidden, enc, mask_f, prep):
    """Pallas version of Decoder.forward.  `enc`, `mask_f` come from
    prepare_sequence; `prep` from prepare_params.
    Returns (prediction, new_hidden, attention)."""
    emb = prep["emb_table"][tokens]        # [B, E] bf16 row gather (glue)
    hid = hidden.astype(jnp.float32)

    B, S, Eh2 = enc.shape
    H = prep["w_hh"].shape[0]
    O = prep["fc_b"].shape[1]
    pack = ((O + H + S + 127) // 128) * 128   # lane-dense packed output width

    vmem = pl.BlockSpec(memory_space=pltpu.MemorySpace.VMEM)
    in_arrays = (emb, hid, enc, mask_f,
                 prep["attn_wh"], prep["attn_we"], prep["attn_b"], prep["attn_v"],
                 prep["w_ih"], prep["w_hh"], prep["b_ih"], prep["b_hh"],
                 prep["fc_w"], prep["fc_b"])

    packed = pl.pallas_call(
        _decoder_kernel,
        out_shape=jax.ShapeDtypeStruct((B, pack), jnp.float32),
        in_specs=[vmem] * len(in_arrays),
        out_specs=vmem,
    )(*in_arrays)

    pred = packed[:, :O]
    h_new = packed[:, O:O + H]
    a = packed[:, O + H:O + H + S]
    return pred, h_new, a


# --------------------------------------------------------------------------
# Parameter init + pure-JAX f32 reference (mirrors the torch forward)
# --------------------------------------------------------------------------
def init_params(key, output_dim, emb_dim, enc_hid_dim, dec_hid_dim):
    ks = jax.random.split(key, 10)

    def rnd(k, shape, scale=0.1):
        return jax.random.normal(k, shape, dtype=jnp.float32) * scale

    H, E, Eh2 = dec_hid_dim, emb_dim, 2 * enc_hid_dim
    return {
        "emb_table": rnd(ks[0], (output_dim, E), 0.5),
        # attention: Linear(2*enc_hid + dec_hid -> dec_hid), stored transposed (in, out)
        "attn_w": rnd(ks[1], (H + Eh2, H)),
        "attn_b": rnd(ks[2], (1, H)),
        "attn_v": rnd(ks[3], (1, H)),                 # v: Linear(dec_hid -> 1, no bias)
        # GRU(enc_hid*2 + emb -> dec_hid), transposed weights, gate order (r, z, n)
        "w_ih": rnd(ks[4], (E + Eh2, 3 * H)),
        "w_hh": rnd(ks[5], (H, 3 * H)),
        "b_ih": rnd(ks[6], (1, 3 * H)),
        "b_hh": rnd(ks[7], (1, 3 * H)),
        # fc_out: Linear(dec_hid + 2*enc_hid + emb -> output_dim), transposed
        "fc_w": rnd(ks[8], (H + Eh2 + E, output_dim)),
        "fc_b": rnd(ks[9], (1, output_dim)),
    }


def decoder_reference(tokens, hidden, encoder_outputs, mask, params):
    enc = jnp.transpose(encoder_outputs, (1, 0, 2))
    emb = params["emb_table"][tokens]
    B, S, _ = enc.shape
    H = hidden.shape[1]
    hid_rep = jnp.broadcast_to(hidden[:, None, :], (B, S, H))
    cat = jnp.concatenate([hid_rep, enc], axis=-1)
    energy = jnp.tanh(cat @ params["attn_w"] + params["attn_b"])
    scores = jnp.einsum("bsh,h->bs", energy, params["attn_v"][0])
    scores = jnp.where(mask == 0, -1e10, scores)
    a = jax.nn.softmax(scores, axis=1)
    weighted = jnp.einsum("bs,bse->be", a, enc)
    x = jnp.concatenate([emb, weighted], axis=1)
    gi = x @ params["w_ih"] + params["b_ih"]
    gh = hidden @ params["w_hh"] + params["b_hh"]
    r = jax.nn.sigmoid(gi[:, :H] + gh[:, :H])
    z = jax.nn.sigmoid(gi[:, H:2 * H] + gh[:, H:2 * H])
    n = jnp.tanh(gi[:, 2 * H:] + r * gh[:, 2 * H:])
    h_new = (1 - z) * n + z * hidden
    cat2 = jnp.concatenate([h_new, weighted, emb], axis=1)
    pred = cat2 @ params["fc_w"] + params["fc_b"]
    return pred, h_new, a


if __name__ == "__main__":
    OUTPUT_DIM, EMB_DIM, ENC_HID, DEC_HID = 64, 32, 32, 32
    B, S = 2, 8

    key = jax.random.PRNGKey(0)
    kp, kt, kh, ke = jax.random.split(key, 4)
    params = init_params(kp, OUTPUT_DIM, EMB_DIM, ENC_HID, DEC_HID)

    tokens = jax.random.randint(kt, (B,), 0, OUTPUT_DIM, dtype=jnp.int32)
    hidden = jax.random.normal(kh, (B, DEC_HID), dtype=jnp.float32) * 0.1
    encoder_outputs = jax.random.normal(ke, (S, B, 2 * ENC_HID), dtype=jnp.float32) * 0.1
    mask = jnp.array([[1.0] * S, [1.0] * 6 + [0.0] * 2], dtype=jnp.float32)

    # One-time prep (per model / per source sequence), hoisted out of the step.
    prep = jax.tree_util.tree_map(jax.block_until_ready, prepare_params(params))
    enc_prep, mask_f = prepare_sequence(encoder_outputs, mask)

    step_fn = jax.jit(decoder_forward)
    pred, h_new, attn = step_fn(tokens, hidden, enc_prep, mask_f, prep)
    jax.block_until_ready((pred, h_new, attn))

    pred_r, h_r, a_r = decoder_reference(tokens, hidden, encoder_outputs, mask, params)
    assert pred.shape == (B, OUTPUT_DIM)
    assert h_new.shape == (B, DEC_HID)
    assert attn.shape == (B, S)
    # bf16 MXU operands with f32 accumulation -> inference-grade tolerance.
    assert jnp.allclose(pred, pred_r, atol=5e-2, rtol=5e-2)
    assert jnp.allclose(h_new, h_r, atol=5e-2, rtol=5e-2)
    assert jnp.allclose(attn, a_r, atol=5e-2, rtol=5e-2)
    print("KERNEL_OK")
</pallas_src>

<mosaic_0001>
module attributes {stable_mosaic.version = 11 : i64} {
  func.func @_decoder_kernel(%arg0: memref<2x32xbf16, #tpu.memory_space<vmem>>, %arg1: memref<2x32xf32, #tpu.memory_space<vmem>>, %arg2: memref<2x8x64xbf16, #tpu.memory_space<vmem>>, %arg3: memref<2x8xf32, #tpu.memory_space<vmem>>, %arg4: memref<32x32xbf16, #tpu.memory_space<vmem>>, %arg5: memref<64x32xbf16, #tpu.memory_space<vmem>>, %arg6: memref<1x32xf32, #tpu.memory_space<vmem>>, %arg7: memref<1x32xf32, #tpu.memory_space<vmem>>, %arg8: memref<96x96xbf16, #tpu.memory_space<vmem>>, %arg9: memref<32x96xbf16, #tpu.memory_space<vmem>>, %arg10: memref<1x96xf32, #tpu.memory_space<vmem>>, %arg11: memref<1x96xf32, #tpu.memory_space<vmem>>, %arg12: memref<128x64xbf16, #tpu.memory_space<vmem>>, %arg13: memref<1x64xf32, #tpu.memory_space<vmem>>, %arg14: memref<2x128xf32, #tpu.memory_space<vmem>>) attributes {dimension_semantics = [], scalar_prefetch = 0 : i64, scratch_operands = 0 : i64, tpu.core_type = #tpu.core_type<tc>} {
    %c0 = arith.constant 0 : index
    %c0_0 = arith.constant 0 : index
    %0 = vector.load %arg0[%c0, %c0_0] : memref<2x32xbf16, #tpu.memory_space<vmem>>, vector<2x32xbf16>
    %c0_1 = arith.constant 0 : index
    %c0_2 = arith.constant 0 : index
    %1 = vector.load %arg1[%c0_1, %c0_2] : memref<2x32xf32, #tpu.memory_space<vmem>>, vector<2x32xf32>
    %c0_3 = arith.constant 0 : index
    %c0_4 = arith.constant 0 : index
    %c0_5 = arith.constant 0 : index
    %2 = vector.load %arg2[%c0_3, %c0_4, %c0_5] : memref<2x8x64xbf16, #tpu.memory_space<vmem>>, vector<2x8x64xbf16>
    %c0_6 = arith.constant 0 : index
    %c0_7 = arith.constant 0 : index
    %3 = vector.load %arg3[%c0_6, %c0_7] : memref<2x8xf32, #tpu.memory_space<vmem>>, vector<2x8xf32>
    %4 = arith.truncf %1 : vector<2x32xf32> to vector<2x32xbf16>
    %c0_8 = arith.constant 0 : index
    %c0_9 = arith.constant 0 : index
    %5 = vector.load %arg4[%c0_8, %c0_9] : memref<32x32xbf16, #tpu.memory_space<vmem>>, vector<32x32xbf16>
    %cst = arith.constant dense<0.000000e+00> : vector<2x32xf32>
    %6 = tpu.matmul %4, %5, %cst {dimension_numbers = #tpu.dot_dimension_numbers<[1], [0], [0], [1], [0, 0, 1, 1], [], []>} : vector<2x32xbf16>, vector<32x32xbf16>, vector<2x32xf32> -> vector<2x32xf32>
    %c0_10 = arith.constant 0 : index
    %c0_11 = arith.constant 0 : index
    %7 = vector.load %arg6[%c0_10, %c0_11] : memref<1x32xf32, #tpu.memory_space<vmem>>, vector<1x32xf32>
    %8 = vector.broadcast %7 : vector<1x32xf32> to vector<2x32xf32>
    %9 = arith.addf %6, %8 : vector<2x32xf32>
    %10 = vector.shape_cast %2 : vector<2x8x64xbf16> to vector<16x64xbf16>
    %c0_12 = arith.constant 0 : index
    %c0_13 = arith.constant 0 : index
    %11 = vector.load %arg5[%c0_12, %c0_13] : memref<64x32xbf16, #tpu.memory_space<vmem>>, vector<64x32xbf16>
    %cst_14 = arith.constant dense<0.000000e+00> : vector<16x32xf32>
    %12 = tpu.matmul %10, %11, %cst_14 {dimension_numbers = #tpu.dot_dimension_numbers<[1], [0], [0], [1], [0, 0, 1, 1], [], []>} : vector<16x64xbf16>, vector<64x32xbf16>, vector<16x32xf32> -> vector<16x32xf32>
    %13 = vector.shape_cast %12 : vector<16x32xf32> to vector<2x8x32xf32>
    %14 = vector.shape_cast %9 : vector<2x32xf32> to vector<2x1x32xf32>
    %15 = vector.broadcast %14 : vector<2x1x32xf32> to vector<2x8x32xf32>
    %16 = arith.addf %13, %15 : vector<2x8x32xf32>
    %17 = math.tanh %16 : vector<2x8x32xf32>
    %c0_15 = arith.constant 0 : index
    %c0_16 = arith.constant 0 : index
    %18 = vector.load %arg7[%c0_15, %c0_16] : memref<1x32xf32, #tpu.memory_space<vmem>>, vector<1x32xf32>
    %19 = vector.shape_cast %18 : vector<1x32xf32> to vector<1x1x32xf32>
    %20 = vector.broadcast %19 : vector<1x1x32xf32> to vector<2x8x32xf32>
    %21 = arith.mulf %17, %20 : vector<2x8x32xf32>
    %cst_17 = arith.constant dense<0.000000e+00> : vector<2x8xf32>
    %22 = vector.multi_reduction <add>, %21, %cst_17 [2] : vector<2x8x32xf32> to vector<2x8xf32>
    %cst_18 = arith.constant 0.000000e+00 : f32
    %23 = vector.broadcast %cst_18 : f32 to vector<2x8xf32>
    %24 = arith.cmpf oeq, %3, %23 : vector<2x8xf32>
    %cst_19 = arith.constant -1.000000e+10 : f32
    %25 = vector.broadcast %cst_19 : f32 to vector<2x8xf32>
    %26 = arith.select %24, %25, %22 : vector<2x8xi1>, vector<2x8xf32>
    %cst_20 = arith.constant dense<0xFF800000> : vector<2xf32>
    %27 = vector.multi_reduction <maximumf>, %26, %cst_20 [1] : vector<2x8xf32> to vector<2xf32>
    %28 = vector.shape_cast %27 : vector<2xf32> to vector<2x1xf32>
    %29 = vector.broadcast %28 : vector<2x1xf32> to vector<2x8xf32>
    %30 = arith.subf %26, %29 : vector<2x8xf32>
    %31 = math.exp %30 : vector<2x8xf32>
    %cst_21 = arith.constant dense<0.000000e+00> : vector<2xf32>
    %32 = vector.multi_reduction <add>, %31, %cst_21 [1] : vector<2x8xf32> to vector<2xf32>
    %33 = vector.shape_cast %32 : vector<2xf32> to vector<2x1xf32>
    %34 = vector.broadcast %33 : vector<2x1xf32> to vector<2x8xf32>
    %35 = arith.divf %31, %34 : vector<2x8xf32>
    %36 = vector.shape_cast %35 : vector<2x8xf32> to vector<2x8x1xf32>
    %37 = arith.extf %2 : vector<2x8x64xbf16> to vector<2x8x64xf32>
    %38 = vector.broadcast %36 : vector<2x8x1xf32> to vector<2x8x64xf32>
    %39 = arith.mulf %38, %37 : vector<2x8x64xf32>
    %cst_22 = arith.constant dense<0.000000e+00> : vector<2x64xf32>
    %40 = vector.multi_reduction <add>, %39, %cst_22 [1] : vector<2x8x64xf32> to vector<2x64xf32>
    %41 = arith.truncf %40 : vector<2x64xf32> to vector<2x64xbf16>
    %42 = tpu.concatenate %0, %41 in 1 : vector<2x32xbf16>, vector<2x64xbf16> -> vector<2x96xbf16>
    %c0_23 = arith.constant 0 : index
    %c0_24 = arith.constant 0 : index
    %43 = vector.load %arg8[%c0_23, %c0_24] : memref<96x96xbf16, #tpu.memory_space<vmem>>, vector<96x96xbf16>
    %cst_25 = arith.constant dense<0.000000e+00> : vector<2x96xf32>
    %44 = tpu.matmul %42, %43, %cst_25 {dimension_numbers = #tpu.dot_dimension_numbers<[1], [0], [0], [1], [0, 0, 1, 1], [], []>} : vector<2x96xbf16>, vector<96x96xbf16>, vector<2x96xf32> -> vector<2x96xf32>
    %c0_26 = arith.constant 0 : index
    %c0_27 = arith.constant 0 : index
    %45 = vector.load %arg10[%c0_26, %c0_27] : memref<1x96xf32, #tpu.memory_space<vmem>>, vector<1x96xf32>
    %46 = vector.broadcast %45 : vector<1x96xf32> to vector<2x96xf32>
    %47 = arith.addf %44, %46 : vector<2x96xf32>
    %c0_28 = arith.constant 0 : index
    %c0_29 = arith.constant 0 : index
    %48 = vector.load %arg9[%c0_28, %c0_29] : memref<32x96xbf16, #tpu.memory_space<vmem>>, vector<32x96xbf16>
    %cst_30 = arith.constant dense<0.000000e+00> : vector<2x96xf32>
    %49 = tpu.matmul %4, %48, %cst_30 {dimension_numbers = #tpu.dot_dimension_numbers<[1], [0], [0], [1], [0, 0, 1, 1], [], []>} : vector<2x32xbf16>, vector<32x96xbf16>, vector<2x96xf32> -> vector<2x96xf32>
    %c0_31 = arith.constant 0 : index
    %c0_32 = arith.constant 0 : index
    %50 = vector.load %arg11[%c0_31, %c0_32] : memref<1x96xf32, #tpu.memory_space<vmem>>, vector<1x96xf32>
    %51 = vector.broadcast %50 : vector<1x96xf32> to vector<2x96xf32>
    %52 = arith.addf %49, %51 : vector<2x96xf32>
    %53 = vector.extract_strided_slice %47 {offsets = [0, 0], sizes = [2, 32], strides = [1, 1]} : vector<2x96xf32> to vector<2x32xf32>
    %54 = vector.extract_strided_slice %52 {offsets = [0, 0], sizes = [2, 32], strides = [1, 1]} : vector<2x96xf32> to vector<2x32xf32>
    %55 = arith.addf %53, %54 : vector<2x32xf32>
    %56 = arith.negf %55 : vector<2x32xf32>
    %57 = math.exp %56 : vector<2x32xf32>
    %cst_33 = arith.constant 1.000000e+00 : f32
    %58 = vector.broadcast %cst_33 : f32 to vector<2x32xf32>
    %59 = arith.addf %58, %57 : vector<2x32xf32>
    %60 = arith.divf %58, %59 : vector<2x32xf32>
    %61 = vector.extract_strided_slice %47 {offsets = [0, 32], sizes = [2, 32], strides = [1, 1]} : vector<2x96xf32> to vector<2x32xf32>
    %62 = vector.extract_strided_slice %52 {offsets = [0, 32], sizes = [2, 32], strides = [1, 1]} : vector<2x96xf32> to vector<2x32xf32>
    %63 = arith.addf %61, %62 : vector<2x32xf32>
    %64 = arith.negf %63 : vector<2x32xf32>
    %65 = math.exp %64 : vector<2x32xf32>
    %cst_34 = arith.constant 1.000000e+00 : f32
    %66 = vector.broadcast %cst_34 : f32 to vector<2x32xf32>
    %67 = arith.addf %66, %65 : vector<2x32xf32>
    %68 = arith.divf %66, %67 : vector<2x32xf32>
    %69 = vector.extract_strided_slice %47 {offsets = [0, 64], sizes = [2, 32], strides = [1, 1]} : vector<2x96xf32> to vector<2x32xf32>
    %70 = vector.extract_strided_slice %52 {offsets = [0, 64], sizes = [2, 32], strides = [1, 1]} : vector<2x96xf32> to vector<2x32xf32>
    %71 = arith.mulf %60, %70 : vector<2x32xf32>
    %72 = arith.addf %69, %71 : vector<2x32xf32>
    %73 = math.tanh %72 : vector<2x32xf32>
    %cst_35 = arith.constant 1.000000e+00 : f32
    %74 = vector.broadcast %cst_35 : f32 to vector<2x32xf32>
    %75 = arith.subf %74, %68 : vector<2x32xf32>
    %76 = arith.mulf %75, %73 : vector<2x32xf32>
    %77 = arith.mulf %68, %1 : vector<2x32xf32>
    %78 = arith.addf %76, %77 : vector<2x32xf32>
    %79 = arith.truncf %78 : vector<2x32xf32> to vector<2x32xbf16>
    %80 = tpu.concatenate %79, %41, %0 in 1 : vector<2x32xbf16>, vector<2x64xbf16>, vector<2x32xbf16> -> vector<2x128xbf16>
    %c0_36 = arith.constant 0 : index
    %c0_37 = arith.constant 0 : index
    %81 = vector.load %arg12[%c0_36, %c0_37] : memref<128x64xbf16, #tpu.memory_space<vmem>>, vector<128x64xbf16>
    %cst_38 = arith.constant dense<0.000000e+00> : vector<2x64xf32>
    %82 = tpu.matmul %80, %81, %cst_38 {dimension_numbers = #tpu.dot_dimension_numbers<[1], [0], [0], [1], [0, 0, 1, 1], [], []>} : vector<2x128xbf16>, vector<128x64xbf16>, vector<2x64xf32> -> vector<2x64xf32>
    %c0_39 = arith.constant 0 : index
    %c0_40 = arith.constant 0 : index
    %83 = vector.load %arg13[%c0_39, %c0_40] : memref<1x64xf32, #tpu.memory_space<vmem>>, vector<1x64xf32>
    %84 = vector.broadcast %83 : vector<1x64xf32> to vector<2x64xf32>
    %85 = arith.addf %82, %84 : vector<2x64xf32>
    %cst_41 = arith.constant 0.000000e+00 : f32
    %86 = vector.broadcast %cst_41 : f32 to vector<2x24xf32>
    %87 = tpu.concatenate %85, %78, %35, %86 in 1 : vector<2x64xf32>, vector<2x32xf32>, vector<2x8xf32>, vector<2x24xf32> -> vector<2x128xf32>
    %c0_42 = arith.constant 0 : index
    %c0_43 = arith.constant 0 : index
    %88 = vector.load %arg14[%c0_42, %c0_43] : memref<2x128xf32, #tpu.memory_space<vmem>>, vector<2x128xf32>
    tpu.vector_store %arg14[%c0_42, %c0_43], %87 {strides = array<i32>} : memref<2x128xf32, #tpu.memory_space<vmem>>, vector<2x128xf32>,
    return
  }
}

</mosaic_0001>

<llo_original>
// kernel: decoder_forward.1
$region0: #{decoder_forward.1}
  #allocation0 [shape = 'u32[]', space=smem, size = 0x4, offset = 0x4, fixed_abs, tag = 'smem constant byte address 0x4 - core index']
  #allocation1 [shape = 'u32[144,128]{1,0:T(1,128)}', space=vmem, size = 0x12000, scoped, tag = 'internal scratch']
  %s0 = inlined_call_operand.vmem [shape: bf16[2,32], index: 0, kind: input, shape index: {}]
  %s1 = inlined_call_operand.vmem [shape: f32[2,32], index: 1, kind: input, shape index: {}]
  %s2 = inlined_call_operand.vmem [shape: bf16[2,8,64], index: 2, kind: input, shape index: {}]
  %s3 = inlined_call_operand.vmem [shape: f32[2,8], index: 3, kind: input, shape index: {}]
  %s4 = inlined_call_operand.vmem [shape: bf16[32,32], index: 4, kind: input, shape index: {}]
  %s5 = inlined_call_operand.vmem [shape: bf16[64,32], index: 5, kind: input, shape index: {}]
  %s6 = inlined_call_operand.vmem [shape: f32[1,32], index: 6, kind: input, shape index: {}]
  %s7 = inlined_call_operand.vmem [shape: f32[1,32], index: 7, kind: input, shape index: {}]
  %s8 = inlined_call_operand.vmem [shape: bf16[96,96], index: 8, kind: input, shape index: {}]
  %s9 = inlined_call_operand.vmem [shape: bf16[32,96], index: 9, kind: input, shape index: {}]
  %s10 = inlined_call_operand.vmem [shape: f32[1,96], index: 10, kind: input, shape index: {}]
  %s11 = inlined_call_operand.vmem [shape: f32[1,96], index: 11, kind: input, shape index: {}]
  %s12 = inlined_call_operand.vmem [shape: bf16[128,64], index: 12, kind: input, shape index: {}]
  %s13 = inlined_call_operand.vmem [shape: f32[1,64], index: 13, kind: input, shape index: {}]
  %s14 = inlined_call_operand.vmem [shape: f32[2,128], index: 14, kind: output, shape index: {}]
  %s15 = sld [smem:[#allocation0]]
  $region66: #{decoder_forward.1} parent=0
    _
  %s17 = ssub.s32 1, %s15
  %s18 = scalar_select 0, %s17, %s15
  // Predicated region
  $region2: #{decoder_forward.1} parent=0 // pred_check
    _
  $region3: #{decoder_forward.1} parent=0 // pred_check_branch
    %20 = sbr.rel (0) target = $region5
  $region4: #{decoder_forward.1} parent=0 // pred_region
    _
  $region5: #{decoder_forward.1} parent=0 // pred_fallthru
    _
  // Predicated region
  $region6: #{decoder_forward.1} parent=0 // pred_check
    _
  $region7: #{decoder_forward.1} parent=0 // pred_check_branch
    %22 = sbr.rel (0) target = $region9
  $region8: #{decoder_forward.1} parent=0 // pred_region
    _
  $region9: #{decoder_forward.1} parent=0 // pred_fallthru
    _
  // Predicated region
  $region10: #{decoder_forward.1} parent=0 // pred_check
    _
  $region11: #{decoder_forward.1} parent=0 // pred_check_branch
    %24 = sbr.rel (0) target = $region13
  $region12: #{decoder_forward.1} parent=0 // pred_region
    _
  $region13: #{decoder_forward.1} parent=0 // pred_fallthru
    _
  // Predicated region
  $region14: #{decoder_forward.1} parent=0 // pred_check
    _
  $region15: #{decoder_forward.1} parent=0 // pred_check_branch
    %26 = sbr.rel (0) target = $region17
  $region16: #{decoder_forward.1} parent=0 // pred_region
    _
  $region17: #{decoder_forward.1} parent=0 // pred_fallthru
    _
  // Predicated region
  $region18: #{decoder_forward.1} parent=0 // pred_check
    _
  $region19: #{decoder_forward.1} parent=0 // pred_check_branch
    %28 = sbr.rel (0) target = $region21
  $region20: #{decoder_forward.1} parent=0 // pred_region
    _
  $region21: #{decoder_forward.1} parent=0 // pred_fallthru
    _
  // Predicated region
  $region22: #{decoder_forward.1} parent=0 // pred_check
    _
  $region23: #{decoder_forward.1} parent=0 // pred_check_branch
    %30 = sbr.rel (0) target = $region25
  $region24: #{decoder_forward.1} parent=0 // pred_region
    _
  $region25: #{decoder_forward.1} parent=0 // pred_fallthru
    _
  // Predicated region
  $region26: #{decoder_forward.1} parent=0 // pred_check
    _
  $region27: #{decoder_forward.1} parent=0 // pred_check_branch
    %32 = sbr.rel (0) target = $region29
  $region28: #{decoder_forward.1} parent=0 // pred_region
    _
  $region29: #{decoder_forward.1} parent=0 // pred_fallthru
    _
  // Predicated region
  $region30: #{decoder_forward.1} parent=0 // pred_check
    _
  $region31: #{decoder_forward.1} parent=0 // pred_check_branch
    %34 = sbr.rel (0) target = $region33
  $region32: #{decoder_forward.1} parent=0 // pred_region
    _
  $region33: #{decoder_forward.1} parent=0 // pred_fallthru
    _
  // Predicated region
  $region34: #{decoder_forward.1} parent=0 // pred_check
    _
  $region35: #{decoder_forward.1} parent=0 // pred_check_branch
    %36 = sbr.rel (0) target = $region37
  $region36: #{decoder_forward.1} parent=0 // pred_region
    _
  $region37: #{decoder_forward.1} parent=0 // pred_fallthru
    _
  // Predicated region
  $region38: #{decoder_forward.1} parent=0 // pred_check
    _
  $region39: #{decoder_forward.1} parent=0 // pred_check_branch
    %38 = sbr.rel (0) target = $region41
  $region40: #{decoder_forward.1} parent=0 // pred_region
    _
  $region41: #{decoder_forward.1} parent=0 // pred_fallthru
    _
  // Predicated region
  $region42: #{decoder_forward.1} parent=0 // pred_check
    _
  $region43: #{decoder_forward.1} parent=0 // pred_check_branch
    %40 = sbr.rel (0) target = $region45
  $region44: #{decoder_forward.1} parent=0 // pred_region
    _
  $region45: #{decoder_forward.1} parent=0 // pred_fallthru
    _
  // Predicated region
  $region46: #{decoder_forward.1} parent=0 // pred_check
    _
  $region47: #{decoder_forward.1} parent=0 // pred_check_branch
    %42 = sbr.rel (0) target = $region49
  $region48: #{decoder_forward.1} parent=0 // pred_region
    _
  $region49: #{decoder_forward.1} parent=0 // pred_fallthru
    _
  // Predicated region
  $region50: #{decoder_forward.1} parent=0 // pred_check
    _
  $region51: #{decoder_forward.1} parent=0 // pred_check_branch
    %44 = sbr.rel (0) target = $region53
  $region52: #{decoder_forward.1} parent=0 // pred_region
    _
  $region53: #{decoder_forward.1} parent=0 // pred_fallthru
    _
  // Predicated region
  $region54: #{decoder_forward.1} parent=0 // pred_check
    _
  $region55: #{decoder_forward.1} parent=0 // pred_check_branch
    %46 = sbr.rel (0) target = $region57
  $region56: #{decoder_forward.1} parent=0 // pred_region
    _
  $region57: #{decoder_forward.1} parent=0 // pred_fallthru
    _
  %v48 = vld [vmem:[%s0] sm:$0x1]
  %v49 = vld [vmem:[%s1] sm:$0x3]
  %v50 = vld [vmem:[%s2] sm:$0xf]
  %v51 = vld [vmem:[%s2 + $0x4] sm:$0xf]
  %v52 = vld [vmem:[%s3] sm:$0x3]
  %v53 = vpack.c.bf16 %v49, %v49
  %v54 = vld [vmem:[%s4] sm:$0xf]
  %v55 = vld [vmem:[%s4 + $0x4] sm:$0xf]
  %v56 = vld [vmem:[%s4 + $0x8] sm:$0xf]
  %v57 = vld [vmem:[%s4 + $0xc] sm:$0xf]
  %v58 = vld [vmem:[%s6] sm:$0x1]
  %v60 = vlaneseq
  %v61 = vshrl.u32 %v60, 7
  %v62 = vsub.s32 0, %v61
  %v63 = vrot.slane %v58, %v62
  %v69 = vunpack.c.l.b16 %v54
  %v70 = vunpack.c.l.b16 %v55
  %v71 = vunpack.c.l.b16 %v56
  %v72 = vunpack.c.l.b16 %v57
  %v73 = vpack.c.b16 %v70, %v69
  %v74 = vpack.c.b16 %v72, %v71
  %vm77 = vcmask 261120
  %v79 = vsel %vm77, %v53, 0
  %81 = vmatprep.subr.bf16.mxu0 0
  %82 = vmatpush1.bf16.msra.mxu0 0
  %83 = vmatprep.subr.bf16.mxu0 0
  %84 = vmatpush1.bf16.msra.mxu0 0
  %85 = vmatprep.subr.bf16.mxu0 0
  %86 = vmatpush1.bf16.msra.mxu0 0
  %87 = vmatprep.subr.bf16.mxu0 0
  %88 = vmatpush1.bf16.msra.mxu0 0
  %89 = vmatprep.subr.bf16.mxu0 0
  %90 = vmatpush1.bf16.msra.mxu0 0
  %91 = vmatprep.subr.bf16.mxu0 0
  %92 = vmatpush1.bf16.msra.mxu0 0
  %93 = vmatprep.subr.bf16.mxu0 0
  %94 = vmatpush1.bf16.msra.mxu0 %v74
  %95 = vmatprep.subr.bf16.mxu0 0
  %96 = vmatpush1.bf16.msra.mxu0 %v73
  %97 = vmatprep.subr.bf16.mxu0 0
  %98 = vmatpush2.bf16.msra.mxu0 0
  %99 = vmatprep.subr.bf16.mxu0 0
  %100 = vmatpush2.bf16.msra.mxu0 0
  %101 = vmatprep.subr.bf16.mxu0 0
  %102 = vmatpush2.bf16.msra.mxu0 0
  %103 = vmatprep.subr.bf16.mxu0 0
  %104 = vmatpush2.bf16.msra.mxu0 0
  %105 = vmatprep.subr.bf16.mxu0 0
  %106 = vmatpush2.bf16.msra.mxu0 0
  %107 = vmatprep.subr.bf16.mxu0 0
  %108 = vmatpush2.bf16.msra.mxu0 0
  %109 = vmatprep.subr.bf16.mxu0 0
  %110 = vmatpush2.bf16.msra.mxu0 0
  %111 = vmatprep.subr.bf16.mxu0 0
  %112 = vmatpush2.bf16.msra.mxu0 0
  %113 = vmatprep.mubr.bf16.mxu0 0
  %114 = vmatmul.mubr.bf16.gmra.mxu0 %v79
  %v115 = vpop.f32.mrf.mxu0
  %v116 = vadd.f32 %v63, %v115
  %v117 = vpop.f32.mrf.mxu0
  %v118 = vpop.f32.mrf.mxu0
  %v119 = vpop.f32.mrf.mxu0
  %120 = vdwg.mxu0
  %v121 = vld [vmem:[%s5] sm:$0xf]
  %v122 = vld [vmem:[%s5 + $0x4] sm:$0xf]
  %v123 = vld [vmem:[%s5 + $0x8] sm:$0xf]
  %v124 = vld [vmem:[%s5 + $0xc] sm:$0xf]
  %v125 = vld [vmem:[%s5 + $0x10] sm:$0xf]
  %v126 = vld [vmem:[%s5 + $0x14] sm:$0xf]
  %v127 = vld [vmem:[%s5 + $0x18] sm:$0xf]
  %v128 = vld [vmem:[%s5 + $0x1c] sm:$0xf]
  %v131 = vunpack.c.l.b16 %v50
  %v132 = vunpack.c.l.b16 %v51
  %v133 = vpack.c.b16 %v132, %v131
  %v142 = vunpack.c.l.b16 %v121
  %v143 = vunpack.c.l.b16 %v122
  %v144 = vunpack.c.l.b16 %v123
  %v145 = vunpack.c.l.b16 %v124
  %v146 = vunpack.c.l.b16 %v125
  %v147 = vunpack.c.l.b16 %v126
  %v148 = vunpack.c.l.b16 %v127
  %v149 = vunpack.c.l.b16 %v128
  %v150 = vpack.c.b16 %v143, %v142
  %v151 = vpack.c.b16 %v145, %v144
  %v152 = vpack.c.b16 %v147, %v146
  %v153 = vpack.c.b16 %v149, %v148
  %vm158 = vcmask 523264
  %v160 = vsel %vm158, %v133, 0
  %162 = vmatprep.subr.bf16.mxu0 0
  %163 = vmatpush1.bf16.msra.mxu0 0
  %164 = vmatprep.subr.bf16.mxu0 0
  %165 = vmatpush1.bf16.msra.mxu0 0
  %166 = vmatprep.subr.bf16.mxu0 0
  %167 = vmatpush1.bf16.msra.mxu0 0
  %168 = vmatprep.subr.bf16.mxu0 0
  %169 = vmatpush1.bf16.msra.mxu0 0
  %170 = vmatprep.subr.bf16.mxu0 0
  %171 = vmatpush1.bf16.msra.mxu0 %v153
  %172 = vmatprep.subr.bf16.mxu0 0
  %173 = vmatpush1.bf16.msra.mxu0 %v152
  %174 = vmatprep.subr.bf16.mxu0 0
  %175 = vmatpush1.bf16.msra.mxu0 %v151
  %176 = vmatprep.subr.bf16.mxu0 0
  %177 = vmatpush1.bf16.msra.mxu0 %v150
  %178 = vmatprep.subr.bf16.mxu0 0
  %179 = vmatpush2.bf16.msra.mxu0 0
  %180 = vmatprep.subr.bf16.mxu0 0
  %181 = vmatpush2.bf16.msra.mxu0 0
  %182 = vmatprep.subr.bf16.mxu0 0
  %183 = vmatpush2.bf16.msra.mxu0 0
  %184 = vmatprep.subr.bf16.mxu0 0
  %185 = vmatpush2.bf16.msra.mxu0 0
  %186 = vmatprep.subr.bf16.mxu0 0
  %187 = vmatpush2.bf16.msra.mxu0 0
  %188 = vmatprep.subr.bf16.mxu0 0
  %189 = vmatpush2.bf16.msra.mxu0 0
  %190 = vmatprep.subr.bf16.mxu0 0
  %191 = vmatpush2.bf16.msra.mxu0 0
  %192 = vmatprep.subr.bf16.mxu0 0
  %193 = vmatpush2.bf16.msra.mxu0 0
  %194 = vmatprep.mubr.bf16.mxu0 0
  %195 = vmatmul.mubr.bf16.gmra.mxu0 %v160
  %v196 = vpop.f32.mrf.mxu0
  %v197 = vadd.f32 0.0, %v196
  %v198 = vpop.f32.mrf.mxu0
  %v199 = vpop.f32.mrf.mxu0
  %v200 = vadd.f32 0.0, %v199
  %v201 = vpop.f32.mrf.mxu0
  %202 = vdwg.mxu0
  %v205 = vunpack.c.l.s4 1966171168
  %v206 = vunpack.c.0.s8 %v205
  %v207 = vlaneseq
  %v208 = vshrl.u32 %v207, 7
  %v209 = vsub.s32 %v206, %v208
  %v210 = vrot.slane %v116, %v209
  %v211 = vcombine.high %v210, %v210
  %v213 = vunpack.c.l.s4 1966171168
  %v214 = vunpack.c.0.s8 %v213
  %v215 = vlaneseq
  %v216 = vshrl.u32 %v215, 7
  %v217 = vsub.s32 %v214, %v216
  %v218 = vrot.slane %v210, %v217
  %v220 = vunpack.c.l.s4 1966171168
  %v221 = vunpack.c.0.s8 %v220
  %v222 = vlaneseq
  %v223 = vshrl.u32 %v222, 7
  %v224 = vsub.s32 %v221, %v223
  %v225 = vrot.slane %v211, %v224
  %v226 = vlaneseq
  %v227 = vshrl.u32 %v226, 7
  %v228 = vsub.s32 0, %v227
  %v229 = vrot.slane %v218, %v228
  %v230 = vlaneseq
  %v231 = vshrl.u32 %v230, 7
  %v232 = vsub.s32 0, %v231
  %v233 = vrot.slane %v225, %v232
  %v236 = vadd.f32 %v197, %v229
  %v237 = vadd.f32 %v200, %v233
  %v238 = vtanh.pop %v236
  %v239 = vtanh.pop %v237
  %v240 = vld [vmem:[%s7] sm:$0x1]
  %v242 = vlaneseq
  %v243 = vshrl.u32 %v242, 7
  %v244 = vsub.s32 0, %v243
  %v245 = vrot.slane %v240, %v244
  %v247 = vmul.f32 %v238, %v245
  %v248 = vmul.f32 %v239, %v245
  %v249 = vsel %vm77, %v247, 0.0
  %250 = vadd.xlane.f32.xlu0 %v249
  %v251 = vpop.xlane.xlu0 %250
  %v252 = vsel %vm77, %v248, 0.0
  %253 = vadd.xlane.f32.xlu0 %v252
  %v254 = vpop.xlane.xlu0 %253
  %vm255 = vcmp.eq.f32.partialorder %v52, 0.0
  %v258 = vlaneseq
  %v259 = vand.u32 %v258, 127
  %v260 = vlaneseq
  %v261 = vshrl.u32 %v260, 7
  %v262 = vsub.s32 %v259, %v261
  %v263 = vrot.slane %v251, %v262
  %v264 = vlaneseq
  %v265 = vshrl.u32 %v264, 7
  %v266 = vsub.s32 %v259, %v265
  %v267 = vrot.slane %v254, %v266
  %vm268 = vcmask 1041409
  %v269 = vsel %vm268, %v267, %v263
  %v271 = vsel %vm255, -1e+10, %v269
  %vm272 = vcmask 58368
  %v273 = vsel %vm272, %v271, -inf
  %274 = vmax.xlane.f32.xlu0 %v273
  %v275 = vpop.xlane.xlu0 %274
  %v276 = vsub.f32 %v271, %v275
  %v277 = vmul.f32 %v276, 1.442695
  %v278 = vpow.pop %v277
  %v279 = vsel %vm272, %v278, 0.0
  %280 = vadd.xlane.f32.xlu0 %v279
  %v281 = vpop.xlane.xlu0 %280
  %v282 = vrcp.pop %v281
  %v283 = vmul.f32 %v278, %v282
  %v284 = vlaneseq
  %v285 = vshrl.u32 %v284, 7
  %v286 = vsub.s32 0, %v285
  %v287 = vrot.slane %v283, %v286
  %289 = vbcast.lane.b32.xlu0 %v287, 256
  %v290 = vpop.permute.xlu0 %289
  %v291 = vlaneseq
  %v292 = vshrl.u32 %v291, 7
  %v293 = vsub.s32 1, %v292
  %v294 = vrot.slane %v283, %v293
  %296 = vbcast.lane.b32.xlu0 %v294, 256
  %v297 = vpop.permute.xlu0 %296
  %v298 = vunpack.c.l.bf16 %v50
  %v299 = vunpack.c.l.bf16 %v51
  %v300 = vmul.f32 %v290, %v298
  %v301 = vmul.f32 %v297, %v299
  %v302 = vsel %vm158, %v300, 0.0
  %v303 = vrot.slane %v302, 4
  %v304 = vadd.f32 %v302, %v303
  %v305 = vrot.slane %v304, 2
  %v306 = vadd.f32 %v304, %v305
  %v307 = vrot.slane %v306, 1
  %v308 = vadd.f32 %v306, %v307
  %v309 = vsel %vm158, %v301, 0.0
  %v310 = vrot.slane %v309, 4
  %v311 = vadd.f32 %v309, %v310
  %v312 = vrot.slane %v311, 2
  %v313 = vadd.f32 %v311, %v312
  %v314 = vrot.slane %v313, 1
  %v315 = vadd.f32 %v313, %v314
  %v316 = vpack.c.bf16 %v308, %v308
  %v317 = vpack.c.bf16 %v315, %v315
  %v320 = vunpack.c.l.b16 %v316
  %v321 = vunpack.c.l.b16 %v317
  %v322 = vsel %vm268, %v321, %v320
  %v323 = vpack.c.b16 %v322, %v322
  %324 = vrot.lane.b32.xlu0 %v323, 32
  %v325 = vpop.permute.xlu0 %324
  %v328 = vsel %vm77, %v48, %v325
  %v329 = vld [vmem:[%s8] sm:$0xf]
  %v330 = vld [vmem:[%s8 + $0x4] sm:$0xf]
  %v331 = vld [vmem:[%s8 + $0x8] sm:$0xf]
  %v332 = vld [vmem:[%s8 + $0xc] sm:$0xf]
  %v333 = vld [vmem:[%s8 + $0x10] sm:$0xf]
  %v334 = vld [vmem:[%s8 + $0x14] sm:$0xf]
  %v335 = vld [vmem:[%s8 + $0x18] sm:$0xf]
  %v336 = vld [vmem:[%s8 + $0x1c] sm:$0xf]
  %v337 = vld [vmem:[%s8 + $0x20] sm:$0xf]
  %v338 = vld [vmem:[%s8 + $0x24] sm:$0xf]
  %v339 = vld [vmem:[%s8 + $0x28] sm:$0xf]
  %v340 = vld [vmem:[%s8 + $0x2c] sm:$0xf]
  %v341 = vld [vmem:[%s10] sm:$0x1]
  %v343 = vlaneseq
  %v344 = vshrl.u32 %v343, 7
  %v345 = vsub.s32 0, %v344
  %v346 = vrot.slane %v341, %v345
  %v360 = vunpack.c.l.b16 %v329
  %v361 = vunpack.c.l.b16 %v330
  %v362 = vunpack.c.l.b16 %v331
  %v363 = vunpack.c.l.b16 %v332
  %v364 = vunpack.c.l.b16 %v333
  %v365 = vunpack.c.l.b16 %v334
  %v366 = vunpack.c.l.b16 %v335
  %v367 = vunpack.c.l.b16 %v336
  %v368 = vunpack.c.l.b16 %v337
  %v369 = vunpack.c.l.b16 %v338
  %v370 = vunpack.c.l.b16 %v339
  %v371 = vunpack.c.l.b16 %v340
  %v372 = vpack.c.b16 %v361, %v360
  %v373 = vpack.c.b16 %v363, %v362
  %v374 = vpack.c.b16 %v365, %v364
  %v375 = vpack.c.b16 %v367, %v366
  %v376 = vpack.c.b16 %v369, %v368
  %v377 = vpack.c.b16 %v371, %v370
  %vm384 = vcmask 785408
  %v385 = vsel %vm384, %v328, 0
  %387 = vmatprep.subr.bf16.mxu0 0
  %388 = vmatpush1.bf16.msra.mxu0 0
  %389 = vmatprep.subr.bf16.mxu0 0
  %390 = vmatpush1.bf16.msra.mxu0 0
  %391 = vmatprep.subr.bf16.mxu0 0
  %392 = vmatpush1.bf16.msra.mxu0 %v377
  %393 = vmatprep.subr.bf16.mxu0 0
  %394 = vmatpush1.bf16.msra.mxu0 %v376
  %395 = vmatprep.subr.bf16.mxu0 0
  %396 = vmatpush1.bf16.msra.mxu0 %v375
  %397 = vmatprep.subr.bf16.mxu0 0
  %398 = vmatpush1.bf16.msra.mxu0 %v374
  %399 = vmatprep.subr.bf16.mxu0 0
  %400 = vmatpush1.bf16.msra.mxu0 %v373
  %401 = vmatprep.subr.bf16.mxu0 0
  %402 = vmatpush1.bf16.msra.mxu0 %v372
  %403 = vmatprep.subr.bf16.mxu0 0
  %404 = vmatpush2.bf16.msra.mxu0 0
  %405 = vmatprep.subr.bf16.mxu0 0
  %406 = vmatpush2.bf16.msra.mxu0 0
  %407 = vmatprep.subr.bf16.mxu0 0
  %408 = vmatpush2.bf16.msra.mxu0 0
  %409 = vmatprep.subr.bf16.mxu0 0
  %410 = vmatpush2.bf16.msra.mxu0 0
  %411 = vmatprep.subr.bf16.mxu0 0
  %412 = vmatpush2.bf16.msra.mxu0 0
  %413 = vmatprep.subr.bf16.mxu0 0
  %414 = vmatpush2.bf16.msra.mxu0 0
  %415 = vmatprep.subr.bf16.mxu0 0
  %416 = vmatpush2.bf16.msra.mxu0 0
  %417 = vmatprep.subr.bf16.mxu0 0
  %418 = vmatpush2.bf16.msra.mxu0 0
  %419 = vmatprep.mubr.bf16.mxu0 0
  %420 = vmatmul.mubr.bf16.gmra.mxu0 %v385
  %v421 = vpop.f32.mrf.mxu0
  %v422 = vadd.f32 %v346, %v421
  %v423 = vpop.f32.mrf.mxu0
  %v424 = vpop.f32.mrf.mxu0
  %v425 = vpop.f32.mrf.mxu0
  %426 = vdwg.mxu0
  %v427 = vld [vmem:[%s9] sm:$0xf]
  %v428 = vld [vmem:[%s9 + $0x4] sm:$0xf]
  %v429 = vld [vmem:[%s9 + $0x8] sm:$0xf]
  %v430 = vld [vmem:[%s9 + $0xc] sm:$0xf]
  %v431 = vld [vmem:[%s11] sm:$0x1]
  %v433 = vlaneseq
  %v434 = vshrl.u32 %v433, 7
  %v435 = vsub.s32 0, %v434
  %v436 = vrot.slane %v431, %v435
  %v442 = vunpack.c.l.b16 %v427
  %v443 = vunpack.c.l.b16 %v428
  %v444 = vunpack.c.l.b16 %v429
  %v445 = vunpack.c.l.b16 %v430
  %v446 = vpack.c.b16 %v443, %v442
  %v447 = vpack.c.b16 %v445, %v444
  %450 = vmatprep.subr.bf16.mxu0 0
  %451 = vmatpush1.bf16.msra.mxu0 0
  %452 = vmatprep.subr.bf16.mxu0 0
  %453 = vmatpush1.bf16.msra.mxu0 0
  %454 = vmatprep.subr.bf16.mxu0 0
  %455 = vmatpush1.bf16.msra.mxu0 0
  %456 = vmatprep.subr.bf16.mxu0 0
  %457 = vmatpush1.bf16.msra.mxu0 0
  %458 = vmatprep.subr.bf16.mxu0 0
  %459 = vmatpush1.bf16.msra.mxu0 0
  %460 = vmatprep.subr.bf16.mxu0 0
  %461 = vmatpush1.bf16.msra.mxu0 0
  %462 = vmatprep.subr.bf16.mxu0 0
  %463 = vmatpush1.bf16.msra.mxu0 %v447
  %464 = vmatprep.subr.bf16.mxu0 0
  %465 = vmatpush1.bf16.msra.mxu0 %v446
  %466 = vmatprep.subr.bf16.mxu0 0
  %467 = vmatpush2.bf16.msra.mxu0 0
  %468 = vmatprep.subr.bf16.mxu0 0
  %469 = vmatpush2.bf16.msra.mxu0 0
  %470 = vmatprep.subr.bf16.mxu0 0
  %471 = vmatpush2.bf16.msra.mxu0 0
  %472 = vmatprep.subr.bf16.mxu0 0
  %473 = vmatpush2.bf16.msra.mxu0 0
  %474 = vmatprep.subr.bf16.mxu0 0
  %475 = vmatpush2.bf16.msra.mxu0 0
  %476 = vmatprep.subr.bf16.mxu0 0
  %477 = vmatpush2.bf16.msra.mxu0 0
  %478 = vmatprep.subr.bf16.mxu0 0
  %479 = vmatpush2.bf16.msra.mxu0 0
  %480 = vmatprep.subr.bf16.mxu0 0
  %481 = vmatpush2.bf16.msra.mxu0 0
  %482 = vmatprep.mubr.bf16.mxu0 0
  %483 = vmatmul.mubr.bf16.gmra.mxu0 %v79
  %v484 = vpop.f32.mrf.mxu0
  %v485 = vadd.f32 %v436, %v484
  %v486 = vpop.f32.mrf.mxu0
  %v487 = vpop.f32.mrf.mxu0
  %v488 = vpop.f32.mrf.mxu0
  %489 = vdwg.mxu0
  %v490 = vadd.f32 %v422, %v485
  %v491 = vxor.u32 %v490, 2147483648
  %v492 = vmul.f32 %v491, 1.442695
  %v493 = vpow.pop %v492
  %v494 = vadd.f32 %v493, 1.0
  %v495 = vrcp.pop %v494
  %v496 = vmul.f32 1.0, %v495
  %498 = vrot.lane.b32.xlu0 %v485, 64
  %v499 = vpop.permute.xlu0 %498
  %v501 = vmul.f32 %v496, %v499
  %503 = vrot.lane.b32.xlu0 %v501, 64
  %v504 = vpop.permute.xlu0 %503
  %v506 = vadd.f32 %v422, %v504
  %v507 = vtanh.pop %v506
  %v508 = vsub.f32 1.0, %v496
  %510 = vrot.lane.b32.xlu0 %v507, 96
  %v511 = vpop.permute.xlu0 %510
  %v513 = vmul.f32 %v508, %v511
  %515 = vrot.lane.b32.xlu0 %v49, 32
  %v516 = vpop.permute.xlu0 %515
  %v518 = vmul.f32 %v496, %v516
  %v519 = vadd.f32 %v513, %v518
  %v520 = vpack.c.bf16 %v519, %v519
  %522 = vrot.lane.b32.xlu0 %v520, 96
  %v523 = vpop.permute.xlu0 %522
  %v526 = vunpack.c.l.s4 1966171168
  %v527 = vunpack.c.0.s8 %v526
  %v528 = vlaneseq
  %v529 = vshrl.u32 %v528, 7
  %v530 = vsub.s32 %v527, %v529
  %v531 = vrot.slane %v48, %v530
  %v533 = vunpack.c.l.s4 1966171168
  %v534 = vunpack.c.0.s8 %v533
  %v535 = vlaneseq
  %v536 = vshrl.u32 %v535, 7
  %v537 = vsub.s32 %v534, %v536
  %v538 = vrot.slane %v531, %v537
  %539 = vrot.lane.b32.xlu0 %v538, 96
  %v540 = vpop.permute.xlu0 %539
  %v542 = vsel %vm77, %v523, %v325
  %v544 = vsel %vm384, %v542, %v540
  %v546 = vld [vmem:[%s12] sm:$0xf]
  %v547 = vld [vmem:[%s12 + $0x4] sm:$0xf]
  %v548 = vld [vmem:[%s12 + $0x8] sm:$0xf]
  %v549 = vld [vmem:[%s12 + $0xc] sm:$0xf]
  %v550 = vld [vmem:[%s12 + $0x10] sm:$0xf]
  %v551 = vld [vmem:[%s12 + $0x14] sm:$0xf]
  %v552 = vld [vmem:[%s12 + $0x18] sm:$0xf]
  %v553 = vld [vmem:[%s12 + $0x1c] sm:$0xf]
  %v554 = vld [vmem:[%s12 + $0x20] sm:$0xf]
  %v555 = vld [vmem:[%s12 + $0x24] sm:$0xf]
  %v556 = vld [vmem:[%s12 + $0x28] sm:$0xf]
  %v557 = vld [vmem:[%s12 + $0x2c] sm:$0xf]
  %v558 = vld [vmem:[%s12 + $0x30] sm:$0xf]
  %v559 = vld [vmem:[%s12 + $0x34] sm:$0xf]
  %v560 = vld [vmem:[%s12 + $0x38] sm:$0xf]
  %v561 = vld [vmem:[%s12 + $0x3c] sm:$0xf]
  %v562 = vld [vmem:[%s13] sm:$0x1]
  %v564 = vlaneseq
  %v565 = vshrl.u32 %v564, 7
  %v566 = vsub.s32 0, %v565
  %v567 = vrot.slane %v562, %v566
  %v585 = vunpack.c.l.b16 %v546
  %v586 = vunpack.c.l.b16 %v547
  %v587 = vunpack.c.l.b16 %v548
  %v588 = vunpack.c.l.b16 %v549
  %v589 = vunpack.c.l.b16 %v550
  %v590 = vunpack.c.l.b16 %v551
  %v591 = vunpack.c.l.b16 %v552
  %v592 = vunpack.c.l.b16 %v553
  %v593 = vunpack.c.l.b16 %v554
  %v594 = vunpack.c.l.b16 %v555
  %v595 = vunpack.c.l.b16 %v556
  %v596 = vunpack.c.l.b16 %v557
  %v597 = vunpack.c.l.b16 %v558
  %v598 = vunpack.c.l.b16 %v559
  %v599 = vunpack.c.l.b16 %v560
  %v600 = vunpack.c.l.b16 %v561
  %v601 = vpack.c.b16 %v586, %v585
  %v602 = vpack.c.b16 %v588, %v587
  %v603 = vpack.c.b16 %v590, %v589
  %v604 = vpack.c.b16 %v592, %v591
  %v605 = vpack.c.b16 %v594, %v593
  %v606 = vpack.c.b16 %v596, %v595
  %v607 = vpack.c.b16 %v598, %v597
  %v608 = vpack.c.b16 %v600, %v599
  %617 = vmatprep.subr.bf16.mxu0 0
  %618 = vmatpush1.bf16.msra.mxu0 %v608
  %619 = vmatprep.subr.bf16.mxu0 0
  %620 = vmatpush1.bf16.msra.mxu0 %v607
  %621 = vmatprep.subr.bf16.mxu0 0
  %622 = vmatpush1.bf16.msra.mxu0 %v606
  %623 = vmatprep.subr.bf16.mxu0 0
  %624 = vmatpush1.bf16.msra.mxu0 %v605
  %625 = vmatprep.subr.bf16.mxu0 0
  %626 = vmatpush1.bf16.msra.mxu0 %v604
  %627 = vmatprep.subr.bf16.mxu0 0
  %628 = vmatpush1.bf16.msra.mxu0 %v603
  %629 = vmatprep.subr.bf16.mxu0 0
  %630 = vmatpush1.bf16.msra.mxu0 %v602
  %631 = vmatprep.subr.bf16.mxu0 0
  %632 = vmatpush1.bf16.msra.mxu0 %v601
  %633 = vmatprep.subr.bf16.mxu0 0
  %634 = vmatpush2.bf16.msra.mxu0 0
  %635 = vmatprep.subr.bf16.mxu0 0
  %636 = vmatpush2.bf16.msra.mxu0 0
  %637 = vmatprep.subr.bf16.mxu0 0
  %638 = vmatpush2.bf16.msra.mxu0 0
  %639 = vmatprep.subr.bf16.mxu0 0
  %640 = vmatpush2.bf16.msra.mxu0 0
  %641 = vmatprep.subr.bf16.mxu0 0
  %642 = vmatpush2.bf16.msra.mxu0 0
  %643 = vmatprep.subr.bf16.mxu0 0
  %644 = vmatpush2.bf16.msra.mxu0 0
  %645 = vmatprep.subr.bf16.mxu0 0
  %646 = vmatpush2.bf16.msra.mxu0 0
  %647 = vmatprep.subr.bf16.mxu0 0
  %648 = vmatpush2.bf16.msra.mxu0 0
  %649 = vmatprep.mubr.bf16.mxu0 0
  %650 = vmatmul.mubr.bf16.gmra.mxu0 %v544
  %v651 = vpop.f32.mrf.mxu0
  %v652 = vadd.f32 %v567, %v651
  %v653 = vpop.f32.mrf.mxu0
  %v654 = vpop.f32.mrf.mxu0
  %v655 = vpop.f32.mrf.mxu0
  %656 = vdwg.mxu0
  %658 = vrot.lane.b32.xlu0 %v519, 32
  %v659 = vpop.permute.xlu0 %658
  %662 = vrot.lane.b32.xlu0 %v283, 96
  %v663 = vpop.permute.xlu0 %662
  %v665 = vsel %vm158, %v652, %v659
  %v666 = vsel %vm384, %v665, %v663
  %vm667 = vcmask 850944
  %v668 = vsel %vm667, %v666, 0.0
  %669 = vst [vmem:[%s14] sm:$0x3] %v668
  // Predicated region
  $region58: #{decoder_forward.1} parent=0 // pred_check
    _
  $region59: #{decoder_forward.1} parent=0 // pred_check_branch
    %671 = sbr.rel (0) target = $region61
  $region60: #{decoder_forward.1} parent=0 // pred_region
    _
  $region61: #{decoder_forward.1} parent=0 // pred_fallthru
    _
  // Predicated region
  $region62: #{decoder_forward.1} parent=0 // pred_check
    _
  $region63: #{decoder_forward.1} parent=0 // pred_check_branch
    %673 = sbr.rel (0) target = $region65
  $region64: #{decoder_forward.1} parent=0 // pred_region
    _
  $region65: #{decoder_forward.1} parent=0 // pred_fallthru
    _

</llo_original>
